<compile_context>
chip_gen: v5e
topology: v5e:2x2
jax: 0.10.0
libtpu: 0.0.40
codegen_flags: <defaults>
</compile_context>

<pallas_src>
import functools

import jax
import jax.numpy as jnp
from jax.experimental import pallas as pl
from jax.experimental.pallas import tpu as pltpu


def _channel_attention_kernel(x_ref, w1_ref, w2_ref, o_ref,
                              sum_acc, max_acc, *,
                              inv_n, n_total, tile_n, needs_mask):
    n = pl.program_id(1)

    # ---- init running accumulators at the first spatial tile of each image
    @pl.when(n == 0)
    def _():
        sum_acc[...] = jnp.zeros_like(sum_acc)
        max_acc[...] = jnp.full_like(max_acc, -jnp.inf)

    # ---- streamed spatial tile: (C, tile_n), C on sublanes, tile_n on lanes
    x = x_ref[0].astype(jnp.float32)

    if needs_mask:
        # Padded tail lanes of the last (ragged) tile hold unspecified data:
        # neutralize them (0 for the sum, -inf for the max).
        lane = jax.lax.broadcasted_iota(jnp.int32, x.shape, 1)
        valid = lane < (n_total - n * tile_n)
        x_sum = jnp.where(valid, x, 0.0)
        x_max = jnp.where(valid, x, -jnp.inf)
    else:
        x_sum = x
        x_max = x

    sum_acc[...] += jnp.sum(x_sum, axis=-1, keepdims=True)                # (C, 1)
    max_acc[...] = jnp.maximum(max_acc[...],
                               jnp.max(x_max, axis=-1, keepdims=True))    # (C, 1)

    # ---- finalize: batched shared MLP on [avg | max] + sigmoid
    @pl.when(n == pl.num_programs(1) - 1)
    def _():
        avg = sum_acc[...] * inv_n                                        # (C, 1)
        mx = max_acc[...]                                                 # (C, 1)
        c = avg.shape[0]

        # Pack avg/max into a 2-column RHS (pure VPU select, no concat).
        col = jax.lax.broadcasted_iota(jnp.int32, (c, 2), 1)
        pooled = jnp.where(col == 0, avg, mx)                             # (C, 2)

        w1 = w1_ref[...].astype(jnp.float32)                              # (Ch, C)
        w2 = w2_ref[...].astype(jnp.float32)                              # (C, Ch)

        h = jnp.maximum(
            jnp.dot(w1, pooled, preferred_element_type=jnp.float32), 0.0)  # (Ch, 2)
        y = jnp.dot(w2, h, preferred_element_type=jnp.float32)             # (C, 2)
        logits = jnp.sum(y, axis=-1, keepdims=True)                        # (C, 1)

        o_ref[0] = (1.0 / (1.0 + jnp.exp(-logits))).astype(o_ref.dtype)


def _pick_spatial_tile(n, c, itemsize, x_budget_bytes):
    """Largest lane-aligned (multiple-of-128) tile whose double-buffered x
    footprint (2 * c * tn * itemsize) fits the byte budget, clamped to N."""
    per_lane = 2 * c * itemsize                      # double-buffered bytes / lane
    lanes = max(x_budget_bytes // per_lane, 128)
    tn = (int(lanes) // 128) * 128
    tn = max(tn, 128)
    n_padded = ((n + 127) // 128) * 128
    tn = min(tn, n_padded)
    if tn >= n:
        return n                                     # full axis: legal, no tail
    return tn


def channel_attention(x, w1, w2, *, x_tile_budget_bytes=None):
    """x: (B, C, H, W) float; w1: (C//4, C); w2: (C, C//4) -> (B, C, 1, 1) f32."""
    B, C, H, W = x.shape
    Ch = w1.shape[0]
    N = H * W
    itemsize = jnp.dtype(x.dtype).itemsize

    # Resident (double-buffered by default) weight bytes, subtracted from the
    # streaming-tile budget so large-C configs stay inside scoped VMEM.
    w_bytes = 2 * (w1.size * jnp.dtype(w1.dtype).itemsize
                   + w2.size * jnp.dtype(w2.dtype).itemsize)

    if x_tile_budget_bytes is None:
        total_budget = 12 * 1024 * 1024              # fits v5e's 16 MiB scoped default
        x_tile_budget_bytes = max(total_budget - w_bytes, 2 * 1024 * 1024)

    tn = _pick_spatial_tile(N, C, itemsize, x_tile_budget_bytes)
    num_n = pl.cdiv(N, tn)
    needs_mask = (N % tn) != 0

    xf = x.reshape(B, C, N)

    # Explicit VMEM limit with headroom (x double-buffer + weights + scratch).
    est_vmem = 2 * C * tn * itemsize + w_bytes + 4 * C * 4 + (1 << 20)
    vmem_limit = int(min(128 * 1024 * 1024,
                         max(32 * 1024 * 1024, est_vmem + (8 << 20))))

    kernel = functools.partial(
        _channel_attention_kernel,
        inv_n=1.0 / float(N), n_total=N, tile_n=tn, needs_mask=needs_mask)

    cost = pl.CostEstimate(
        flops=int(2 * B * C * N + 8 * B * C * Ch),
        transcendentals=int(B * C),
        bytes_accessed=int(B * C * N * itemsize + w_bytes // 2 + B * C * 4),
    )

    out = pl.pallas_call(
        kernel,
        out_shape=jax.ShapeDtypeStruct((B, C, 1), jnp.float32),
        grid=(B, num_n),
        in_specs=[
            pl.BlockSpec((1, C, tn), lambda b, n: (b, 0, n)),   # streamed x tiles
            pl.BlockSpec((Ch, C), lambda b, n: (0, 0)),         # fc1 weight (resident)
            pl.BlockSpec((C, Ch), lambda b, n: (0, 0)),         # fc2 weight (resident)
        ],
        out_specs=pl.BlockSpec((1, C, 1), lambda b, n: (b, 0, 0)),
        scratch_shapes=[
            pltpu.VMEM((C, 1), jnp.float32),   # running spatial sum
            pltpu.VMEM((C, 1), jnp.float32),   # running spatial max
        ],
        compiler_params=pltpu.CompilerParams(
            dimension_semantics=("parallel", "arbitrary"),
            vmem_limit_bytes=vmem_limit),
        cost_estimate=cost,
    )(xf, w1, w2)

    return out.reshape(B, C, 1, 1)


def channel_attention_ref(x, w1, w2):
    """Pure-JAX reference matching the PyTorch forward."""
    avg = jnp.mean(x, axis=(2, 3))            # (B, C)
    mx = jnp.max(x, axis=(2, 3))              # (B, C)

    def mlp(v):
        h = jnp.maximum(v @ w1.T, 0.0)        # (B, Ch)
        return h @ w2.T                       # (B, C)

    out = jax.nn.sigmoid(mlp(avg) + mlp(mx))
    B, C = avg.shape
    return out.reshape(B, C, 1, 1)


if __name__ == "__main__":
    key = jax.random.PRNGKey(0)
    kx, k1, k2, kx2, k3, k4 = jax.random.split(key, 6)

    # ---- test 1: module-consistent small shapes (N divisible by 128 path)
    B, C, H, W = 2, 4, 16, 16
    Ch = max(C // 4, 1)   # module uses in_planes // 4 for fc1's output channels
    x = jax.random.normal(kx, (B, C, H, W), dtype=jnp.float32)
    # 1x1 conv weights (bias=False) with the trailing spatial-1 dims squeezed.
    w1 = jax.random.normal(k1, (Ch, C), dtype=jnp.float32) * 0.5   # fc1: C -> C//4
    w2 = jax.random.normal(k2, (C, Ch), dtype=jnp.float32) * 0.5   # fc2: C//4 -> C

    out = jax.block_until_ready(channel_attention(x, w1, w2))
    ref = channel_attention_ref(x, w1, w2)
    assert out.shape == (B, C, 1, 1)
    assert jnp.allclose(out, ref, atol=1e-5, rtol=1e-5), \
        float(jnp.max(jnp.abs(out - ref)))

    # ---- test 2: non-128-divisible N with a deliberately tiny tile budget,
    # exercising the cdiv grid + masked ragged-tail path.
    B2, C2, H2, W2 = 1, 8, 40, 20             # N = 800
    Ch2 = max(C2 // 4, 1)
    x2 = jax.random.normal(kx2, (B2, C2, H2, W2), dtype=jnp.float32)
    w1b = jax.random.normal(k3, (Ch2, C2), dtype=jnp.float32) * 0.5
    w2b = jax.random.normal(k4, (C2, Ch2), dtype=jnp.float32) * 0.5

    out2 = jax.block_until_ready(
        channel_attention(x2, w1b, w2b, x_tile_budget_bytes=16 * 1024))
    ref2 = channel_attention_ref(x2, w1b, w2b)
    assert out2.shape == (B2, C2, 1, 1)
    assert jnp.allclose(out2, ref2, atol=1e-5, rtol=1e-5), \
        float(jnp.max(jnp.abs(out2 - ref2)))

    print("KERNEL_OK")
</pallas_src>

<mosaic_0001>
module attributes {stable_mosaic.version = 11 : i64} {
  func.func @_channel_attention_kernel(%arg0: i32, %arg1: i32, %arg2: memref<1x4x256xf32, #tpu.memory_space<vmem>>, %arg3: memref<1x4xf32, #tpu.memory_space<vmem>>, %arg4: memref<4x1xf32, #tpu.memory_space<vmem>>, %arg5: memref<1x4x1xf32, #tpu.memory_space<vmem>>, %arg6: memref<4x1xf32, #tpu.memory_space<vmem>>, %arg7: memref<4x1xf32, #tpu.memory_space<vmem>>) attributes {dimension_semantics = [#tpu.dimension_semantics<parallel>, #tpu.dimension_semantics<arbitrary>], iteration_bounds = array<i64: 2, 1>, scalar_prefetch = 0 : i64, scratch_operands = 2 : i64, tpu.core_type = #tpu.core_type<tc>, window_params = [{transform_indices = @transform_0, window_bounds = array<i64: 1, 4, 256>}, {pipeline_mode = #tpu.pipeline_mode<synchronous>, transform_indices = @transform_1, window_bounds = array<i64: 1, 4>}, {pipeline_mode = #tpu.pipeline_mode<synchronous>, transform_indices = @transform_2, window_bounds = array<i64: 4, 1>}, {transform_indices = @transform_3, window_bounds = array<i64: 1, 4, 1>}]} {
    %c0_i32 = arith.constant 0 : i32
    %0 = arith.cmpi eq, %arg1, %c0_i32 : i32
    %1 = arith.extui %0 : i1 to i32
    %c0_i32_0 = arith.constant 0 : i32
    %2 = arith.cmpi ne, %1, %c0_i32_0 : i32
    scf.if %2 {
      %cst_14 = arith.constant 0.000000e+00 : f32
      %18 = vector.broadcast %cst_14 : f32 to vector<4x1xf32>
      %c0_15 = arith.constant 0 : index
      %c0_16 = arith.constant 0 : index
      %19 = vector.load %arg6[%c0_15, %c0_16] : memref<4x1xf32, #tpu.memory_space<vmem>>, vector<4x1xf32>
      tpu.vector_store %arg6[%c0_15, %c0_16], %18 {strides = array<i32>} : memref<4x1xf32, #tpu.memory_space<vmem>>, vector<4x1xf32>,
      %cst_17 = arith.constant 0xFF800000 : f32
      %20 = vector.broadcast %cst_17 : f32 to vector<4x1xf32>
      %c0_18 = arith.constant 0 : index
      %c0_19 = arith.constant 0 : index
      %21 = vector.load %arg7[%c0_18, %c0_19] : memref<4x1xf32, #tpu.memory_space<vmem>>, vector<4x1xf32>
      tpu.vector_store %arg7[%c0_18, %c0_19], %20 {strides = array<i32>} : memref<4x1xf32, #tpu.memory_space<vmem>>, vector<4x1xf32>,
    } else {
    }
    %c0 = arith.constant 0 : index
    %c0_1 = arith.constant 0 : index
    %c0_2 = arith.constant 0 : index
    %3 = vector.load %arg2[%c0, %c0_1, %c0_2] : memref<1x4x256xf32, #tpu.memory_space<vmem>>, vector<1x4x256xf32>
    %4 = vector.shape_cast %3 : vector<1x4x256xf32> to vector<4x256xf32>
    %c0_3 = arith.constant 0 : index
    %c0_4 = arith.constant 0 : index
    %5 = vector.load %arg6[%c0_3, %c0_4] : memref<4x1xf32, #tpu.memory_space<vmem>>, vector<4x1xf32>
    %cst = arith.constant dense<0.000000e+00> : vector<4xf32>
    %6 = vector.multi_reduction <add>, %4, %cst [1] : vector<4x256xf32> to vector<4xf32>
    %7 = vector.shape_cast %6 : vector<4xf32> to vector<4x1xf32>
    %8 = arith.addf %5, %7 : vector<4x1xf32>
    %c0_5 = arith.constant 0 : index
    %c0_6 = arith.constant 0 : index
    %9 = vector.load %arg6[%c0_5, %c0_6] : memref<4x1xf32, #tpu.memory_space<vmem>>, vector<4x1xf32>
    tpu.vector_store %arg6[%c0_5, %c0_6], %8 {strides = array<i32>} : memref<4x1xf32, #tpu.memory_space<vmem>>, vector<4x1xf32>,
    %c0_7 = arith.constant 0 : index
    %c0_8 = arith.constant 0 : index
    %10 = vector.load %arg7[%c0_7, %c0_8] : memref<4x1xf32, #tpu.memory_space<vmem>>, vector<4x1xf32>
    %cst_9 = arith.constant dense<0xFF800000> : vector<4xf32>
    %11 = vector.multi_reduction <maximumf>, %4, %cst_9 [1] : vector<4x256xf32> to vector<4xf32>
    %12 = vector.shape_cast %11 : vector<4xf32> to vector<4x1xf32>
    %13 = arith.maximumf %10, %12 : vector<4x1xf32>
    %c0_10 = arith.constant 0 : index
    %c0_11 = arith.constant 0 : index
    %14 = vector.load %arg7[%c0_10, %c0_11] : memref<4x1xf32, #tpu.memory_space<vmem>>, vector<4x1xf32>
    tpu.vector_store %arg7[%c0_10, %c0_11], %13 {strides = array<i32>} : memref<4x1xf32, #tpu.memory_space<vmem>>, vector<4x1xf32>,
    %c0_i32_12 = arith.constant 0 : i32
    %15 = arith.cmpi eq, %arg1, %c0_i32_12 : i32
    %16 = arith.extui %15 : i1 to i32
    %c0_i32_13 = arith.constant 0 : i32
    %17 = arith.cmpi ne, %16, %c0_i32_13 : i32
    scf.if %17 {
      %c0_14 = arith.constant 0 : index
      %c0_15 = arith.constant 0 : index
      %18 = vector.load %arg6[%c0_14, %c0_15] : memref<4x1xf32, #tpu.memory_space<vmem>>, vector<4x1xf32>
      %cst_16 = arith.constant 3.906250e-03 : f32
      %19 = vector.broadcast %cst_16 : f32 to vector<4x1xf32>
      %20 = arith.mulf %18, %19 : vector<4x1xf32>
      %c0_17 = arith.constant 0 : index
      %c0_18 = arith.constant 0 : index
      %21 = vector.load %arg7[%c0_17, %c0_18] : memref<4x1xf32, #tpu.memory_space<vmem>>, vector<4x1xf32>
      %22 = tpu.iota {dimensions = array<i32: 1>} : vector<4x2xi32>
      %c0_i32_19 = arith.constant 0 : i32
      %23 = vector.broadcast %c0_i32_19 : i32 to vector<4x2xi32>
      %24 = arith.cmpi eq, %22, %23 : vector<4x2xi32>
      %25 = vector.shape_cast %20 : vector<4x1xf32> to vector<4x1xf32>
      %26 = vector.broadcast %25 : vector<4x1xf32> to vector<4x2xf32>
      %27 = vector.shape_cast %21 : vector<4x1xf32> to vector<4x1xf32>
      %28 = vector.broadcast %27 : vector<4x1xf32> to vector<4x2xf32>
      %29 = arith.select %24, %26, %28 : vector<4x2xi1>, vector<4x2xf32>
      %c0_20 = arith.constant 0 : index
      %c0_21 = arith.constant 0 : index
      %30 = vector.load %arg3[%c0_20, %c0_21] : memref<1x4xf32, #tpu.memory_space<vmem>>, vector<1x4xf32>
      %c0_22 = arith.constant 0 : index
      %c0_23 = arith.constant 0 : index
      %31 = vector.load %arg4[%c0_22, %c0_23] : memref<4x1xf32, #tpu.memory_space<vmem>>, vector<4x1xf32>
      %cst_24 = arith.constant dense<0.000000e+00> : vector<1x2xf32>
      %32 = tpu.matmul %30, %29, %cst_24 {dimension_numbers = #tpu.dot_dimension_numbers<[1], [0], [0], [1], [0, 0, 1, 1], [], []>} : vector<1x4xf32>, vector<4x2xf32>, vector<1x2xf32> -> vector<1x2xf32>
      %cst_25 = arith.constant 0.000000e+00 : f32
      %33 = vector.broadcast %cst_25 : f32 to vector<1x2xf32>
      %34 = arith.maximumf %32, %33 : vector<1x2xf32>
      %cst_26 = arith.constant dense<0.000000e+00> : vector<4x2xf32>
      %35 = tpu.matmul %31, %34, %cst_26 {dimension_numbers = #tpu.dot_dimension_numbers<[1], [0], [0], [1], [0, 0, 1, 1], [], []>} : vector<4x1xf32>, vector<1x2xf32>, vector<4x2xf32> -> vector<4x2xf32>
      %cst_27 = arith.constant dense<0.000000e+00> : vector<4xf32>
      %36 = vector.multi_reduction <add>, %35, %cst_27 [1] : vector<4x2xf32> to vector<4xf32>
      %37 = vector.shape_cast %36 : vector<4xf32> to vector<4x1xf32>
      %cst_28 = arith.constant 0.000000e+00 : f32
      %38 = vector.broadcast %cst_28 : f32 to vector<4x1xf32>
      %39 = arith.subf %38, %37 : vector<4x1xf32>
      %40 = math.exp %39 : vector<4x1xf32>
      %cst_29 = arith.constant 1.000000e+00 : f32
      %41 = vector.broadcast %cst_29 : f32 to vector<4x1xf32>
      %42 = arith.addf %41, %40 : vector<4x1xf32>
      %cst_30 = arith.constant 1.000000e+00 : f32
      %43 = vector.broadcast %cst_30 : f32 to vector<4x1xf32>
      %44 = arith.divf %43, %42 : vector<4x1xf32>
      %c0_31 = arith.constant 0 : index
      %c0_32 = arith.constant 0 : index
      %c0_33 = arith.constant 0 : index
      %45 = vector.load %arg5[%c0_31, %c0_32, %c0_33] : memref<1x4x1xf32, #tpu.memory_space<vmem>>, vector<1x4x1xf32>
      %46 = vector.shape_cast %45 : vector<1x4x1xf32> to vector<4x1xf32>
      %47 = vector.shape_cast %44 : vector<4x1xf32> to vector<1x4x1xf32>
      tpu.vector_store %arg5[%c0_31, %c0_32, %c0_33], %47 {strides = array<i32>} : memref<1x4x1xf32, #tpu.memory_space<vmem>>, vector<1x4x1xf32>,
    } else {
    }
    return
  }
  func.func @transform_0(%arg0: i32, %arg1: i32) -> (i32, i32, i32) {
    %c0_i32 = arith.constant 0 : i32
    %c0_i32_0 = arith.constant 0 : i32
    return %arg0, %c0_i32, %arg1 : i32, i32, i32
  }
  func.func @transform_1(%arg0: i32, %arg1: i32) -> (i32, i32) {
    %c0_i32 = arith.constant 0 : i32
    %c0_i32_0 = arith.constant 0 : i32
    %c0_i32_1 = arith.constant 0 : i32
    return %c0_i32, %c0_i32_0 : i32, i32
  }
  func.func @transform_2(%arg0: i32, %arg1: i32) -> (i32, i32) {
    %c0_i32 = arith.constant 0 : i32
    %c0_i32_0 = arith.constant 0 : i32
    %c0_i32_1 = arith.constant 0 : i32
    return %c0_i32, %c0_i32_0 : i32, i32
  }
  func.func @transform_3(%arg0: i32, %arg1: i32) -> (i32, i32, i32) {
    %c0_i32 = arith.constant 0 : i32
    %c0_i32_0 = arith.constant 0 : i32
    %c0_i32_1 = arith.constant 0 : i32
    return %arg0, %c0_i32, %c0_i32_0 : i32, i32, i32
  }
}

</mosaic_0001>

<llo_original>
// kernel: tpu_custom_call.1
$region0: #{tpu_custom_call.1}
  #allocation0 [shape = 'u32[]', space=smem, size = 0x4, offset = 0x4, fixed_abs, tag = 'smem constant byte address 0x4 - core index']
  #allocation1 [shape = 'u32[72,128]{1,0:T(1,128)}', space=vmem, size = 0x9000, scoped, tag = 'internal scratch']
  #allocation2 [shape = 'f32[4,1]{1,0:T(4,128)}', space=vmem, size = 0x800, scoped, tag = 'scratch operand']
  #allocation3 [shape = 'f32[4,1]{1,0:T(4,128)}', space=vmem, size = 0x800, scoped, tag = 'scratch operand']
  %s0 = inlined_call_operand.hbm [shape: f32[2,4,256], index: 0, kind: input, shape index: {}]
  %s1 = inlined_call_operand.vmem [shape: f32[1,4], index: 1, kind: input, shape index: {}]
  %s2 = inlined_call_operand.vmem [shape: f32[4,1], index: 2, kind: input, shape index: {}]
  %s3 = inlined_call_operand.vmem [shape: f32[2,4,1], index: 3, kind: output, shape index: {}]
  %s4 = sld [smem:[#allocation0]]
  $region57: #{tpu_custom_call.1} parent=0
    _
  %s6 = ssub.s32 1, %s4
  %s7 = scalar_select 0, %s6, %s4
  $region1: #{tpu_custom_call.1} parent=0
    #allocation4 [shape = 'u8[8192]{0}', space=vmem, size = 0x2000, scoped, tag = 'input window, operand 0']
    #allocation5 [shape = 's32[2]{0}', space=sflag, size = 0x8, scoped, tag = 'scoped memory for tpu_custom_call.1']
    %8 = vsyncpa [#allocation5], 0
    %s9 = scalar_lea.sflag [#allocation5], 1
    %10 = vsyncpa %s9, 0
    loop: start=0, step=1, limit=4
    $region2: #{tpu_custom_call.1} parent=1 // loop_pre_header
      _
    $region3: #{tpu_custom_call.1} parent=1 // loop_header
      %s12 = sphi 0, %s16
      %p13 = scmp.ge.s32.totalorder %s12, 4
      %s19 = sphi 0, %s31
      %s20 = sphi 0, %s27
      %s21 = sphi 0, %s19
      %s22 = sphi 0, %s20
      %s23 = sphi 0, %s21
      %s24 = sphi 0, %s22
      %s36 = sphi 0, %s38
      %s39 = sphi 0, %s36
      %s40 = sphi 0, %s39
      %s56 = sphi 0, %s40
      %s60 = sphi 0, %s60
      %s62 = sphi 0, %s60
      %s63 = sphi 0, %s62
      %s77 = sphi 0, %s63
      %s81 = sphi 0, %s81
      %s83 = sphi 0, %s81
      %s84 = sphi 0, %s83
      %s98 = sphi 0, %s84
      %s104 = sphi 0, %s106
      %s107 = sphi 0, %s104
      %s108 = sphi 0, %s107
      %s124 = sphi 0, %s108
    $region4: #{tpu_custom_call.1} parent=1 // loop_header_branch
      %15 = sbr.rel (%p13) target = $region8
    $region5: #{tpu_custom_call.1} parent=1 // loop_body
      %s17 = ssub.s32 %s12, 1
      %s18 = ssub.s32 %s12, 2
      %s25 = sadd.s32 1, %s20
      %p26 = scmp.ge.s32.totalorder %s25, 1
      %s27 = scalar_select %p26, 0, %s25
      %s28 = sadd.s32 1, %s19
      %s29 = scalar_select %p26, %s28, %s19
      %p30 = scmp.ge.s32.totalorder %s29, 2
      %s31 = scalar_select %p30, 0, %s29
      %s32 = ssub.s32 %s19, %s31
      %s33 = ssub.s32 %s20, %s27
      %s34 = sor.u32 %s32, %s33
      %p35 = scmp.eq.s32.totalorder %s34, 0
      %s37 = sadd.s32 %s36, 1
      %s38 = scalar_select %p35, %s36, %s37
      %p41 = pneg %p35
      %p42 = scmp.eq.s32.totalorder %s12, 1
      %p43 = por %p41, %p42
      %p44 = scmp.ne.s32.totalorder %s36, %s39
      %p45 = scmp.eq.s32.totalorder %s12, 0
      %p46 = por %p44, %p45
      %p47 = scmp.ne.s32.totalorder %s36, %s39
      %p48 = scmp.eq.s32.totalorder %s17, 1
      %p49 = por %p47, %p48
      %p50 = scmp.ne.s32.totalorder %s39, %s40
      %p51 = scmp.eq.s32.totalorder %s17, 0
      %p52 = por %p50, %p51
      %p53 = scmp.ne.s32.totalorder %s39, %s40
      %p54 = scmp.eq.s32.totalorder %s18, 1
      %p55 = por %p53, %p54
      %p57 = scmp.ne.s32.totalorder %s40, %s56
      %p58 = scmp.eq.s32.totalorder %s18, 0
      %p59 = por %p57, %p58
      %s61 = sadd.s32 %s60, 1
      %p64 = scmp.eq.s32.totalorder %s12, 1
      %p65 = scmp.ne.s32.totalorder %s60, %s62
      %p66 = scmp.eq.s32.totalorder %s12, 0
      %p67 = por %p65, %p66
      %p68 = scmp.ne.s32.totalorder %s60, %s62
      %p69 = scmp.eq.s32.totalorder %s17, 1
      %p70 = por %p68, %p69
      %p71 = scmp.ne.s32.totalorder %s62, %s63
      %p72 = scmp.eq.s32.totalorder %s17, 0
      %p73 = por %p71, %p72
      %p74 = scmp.ne.s32.totalorder %s62, %s63
      %p75 = scmp.eq.s32.totalorder %s18, 1
      %p76 = por %p74, %p75
      %p78 = scmp.ne.s32.totalorder %s63, %s77
      %p79 = scmp.eq.s32.totalorder %s18, 0
      %p80 = por %p78, %p79
      %s82 = sadd.s32 %s81, 1
      %p85 = scmp.eq.s32.totalorder %s12, 1
      %p86 = scmp.ne.s32.totalorder %s81, %s83
      %p87 = scmp.eq.s32.totalorder %s12, 0
      %p88 = por %p86, %p87
      %p89 = scmp.ne.s32.totalorder %s81, %s83
      %p90 = scmp.eq.s32.totalorder %s17, 1
      %p91 = por %p89, %p90
      %p92 = scmp.ne.s32.totalorder %s83, %s84
      %p93 = scmp.eq.s32.totalorder %s17, 0
      %p94 = por %p92, %p93
      %p95 = scmp.ne.s32.totalorder %s83, %s84
      %p96 = scmp.eq.s32.totalorder %s18, 1
      %p97 = por %p95, %p96
      %p99 = scmp.ne.s32.totalorder %s84, %s98
      %p100 = scmp.eq.s32.totalorder %s18, 0
      %p101 = por %p99, %p100
      %s102 = ssub.s32 %s19, %s31
      %p103 = scmp.eq.s32.totalorder %s102, 0
      %s105 = sadd.s32 %s104, 1
      %s106 = scalar_select %p103, %s104, %s105
      %p109 = pneg %p103
      %p110 = scmp.eq.s32.totalorder %s12, 1
      %p111 = por %p109, %p110
      %p112 = scmp.ne.s32.totalorder %s104, %s107
      %p113 = scmp.eq.s32.totalorder %s12, 0
      %p114 = por %p112, %p113
      %p115 = scmp.ne.s32.totalorder %s104, %s107
      %p116 = scmp.eq.s32.totalorder %s17, 1
      %p117 = por %p115, %p116
      %p118 = scmp.ne.s32.totalorder %s107, %s108
      %p119 = scmp.eq.s32.totalorder %s17, 0
      %p120 = por %p118, %p119
      %p121 = scmp.ne.s32.totalorder %s107, %s108
      %p122 = scmp.eq.s32.totalorder %s18, 1
      %p123 = por %p121, %p122
      %p125 = scmp.ne.s32.totalorder %s108, %s124
      %p126 = scmp.eq.s32.totalorder %s18, 0
      %p127 = por %p125, %p126
      %p128 = scmp.le.s32.totalorder 1, %s12
      %p129 = scmp.lt.s32.totalorder %s12, 3
      %p130 = pnand %p128, %p129
      %p131 = pneg %p130
      // Predicated region
      $region9: #{tpu_custom_call.1} parent=5 // pred_check
        _
      $region10: #{tpu_custom_call.1} parent=5 // pred_check_branch
        %133 = sbr.rel (%p130) target = $region12
      $region11: #{tpu_custom_call.1} parent=5 // pred_region
        %s134 = ssub.s32 %s12, 1
        // Predicated region
        $region13: #{tpu_custom_call.1} parent=11 // pred_check
          %p135 = pneg %p73
        $region14: #{tpu_custom_call.1} parent=11 // pred_check_branch
          %137 = sbr.rel (%p135) target = $region16
        $region15: #{tpu_custom_call.1} parent=11 // pred_region
          _
        $region16: #{tpu_custom_call.1} parent=11 // pred_fallthru
          _
        // Predicated region
        $region17: #{tpu_custom_call.1} parent=11 // pred_check
          %p138 = pneg %p94
        $region18: #{tpu_custom_call.1} parent=11 // pred_check_branch
          %140 = sbr.rel (%p138) target = $region20
        $region19: #{tpu_custom_call.1} parent=11 // pred_region
          _
        $region20: #{tpu_custom_call.1} parent=11 // pred_fallthru
          _
      $region12: #{tpu_custom_call.1} parent=5 // pred_fallthru
        _
      %p141 = scmp.lt.s32.totalorder %s12, 2
      // Predicated region
      $region21: #{tpu_custom_call.1} parent=5 // pred_check
        %p142 = pneg %p141
      $region22: #{tpu_custom_call.1} parent=5 // pred_check_branch
        %144 = sbr.rel (%p142) target = $region24
      $region23: #{tpu_custom_call.1} parent=5 // pred_region
        // Predicated region
        $region25: #{tpu_custom_call.1} parent=23 // pred_check
          %p145 = pneg %p46
        $region26: #{tpu_custom_call.1} parent=23 // pred_check_branch
          %147 = sbr.rel (%p145) target = $region28
        $region27: #{tpu_custom_call.1} parent=23 // pred_region
          %s148 = sand.u32 %s36, 1
          %s149 = scalar_lea.sflag [#allocation5], %s148
          %s150 = sand.u32 %s36, 1
          %s151 = smul.addr %s150, 8
          %s152 = scalar_lea.vmem [#allocation4], %s151
          %s153 = smul.u32 2, %s20
          %155 = vsyncadd %s149, 0
          %s156 = smul.addr %s19, 2
          %s157 = sadd.s32 %s153, %s156
          %s158 = smul.addr %s157, 4
          %s159 = scalar_lea.hbm %s0, %s158
          %s161 = sshll.u32 %s159, 4
          %s162 = int_to_ptr.hbm [resolvable:$true] %s161
          %s163 = sshll.u32 %s152, 4
          %s164 = int_to_ptr.vmem [resolvable:$true] %s163
          %166 = dma.hbm_to_vmem [thread:$0]  %s162, 128, %s164, %s149
        $region28: #{tpu_custom_call.1} parent=23 // pred_fallthru
          _
      $region24: #{tpu_custom_call.1} parent=5 // pred_fallthru
        _
      %p167 = scmp.le.s32.totalorder 1, %s12
      %p168 = scmp.lt.s32.totalorder %s12, 3
      %p169 = pnand %p167, %p168
      %p170 = pneg %p169
      // Predicated region
      $region29: #{tpu_custom_call.1} parent=5 // pred_check
        _
      $region30: #{tpu_custom_call.1} parent=5 // pred_check_branch
        %172 = sbr.rel (%p169) target = $region32
      $region31: #{tpu_custom_call.1} parent=5 // pred_region
        %s173 = ssub.s32 %s12, 1
        %s174 = sand.u32 %s39, 1
        %s175 = scalar_lea.sflag [#allocation5], %s174
        %s176 = sand.u32 %s39, 1
        %s177 = smul.addr %s176, 8
        %s178 = scalar_lea.vmem [#allocation4], %s177
        // Predicated region
        $region33: #{tpu_custom_call.1} parent=31 // pred_check
          %p179 = pneg %p52
        $region34: #{tpu_custom_call.1} parent=31 // pred_check_branch
          %181 = sbr.rel (%p179) target = $region36
        $region35: #{tpu_custom_call.1} parent=31 // pred_region
          %183 = dma.done %s175, 128
        $region36: #{tpu_custom_call.1} parent=31 // pred_fallthru
          _
        %s184 = sand.u32 %s39, 1
        %s185 = scalar_lea.sflag [#allocation5], %s184
        %s186 = sand.u32 %s39, 1
        %s187 = smul.addr %s186, 8
        %s188 = scalar_lea.vmem [#allocation4], %s187
        %p189 = pneg %p52
        %p190 = pneg %p49
        %p191 = pneg %p73
        %p192 = pneg %p70
        %p193 = pneg %p94
        %p194 = pneg %p91
        %p195 = pneg %p120
        %p196 = pneg %p117
        %p197 = scmp.lt.s32.totalorder %s21, 1
        %s198 = scalar_select %p197, %s21, 1
        %s199 = smul.addr %s198, 4
        %s200 = scalar_lea.vmem %s3, %s199
        %s201 = smul.u32 2, %s22
        %p202 = scmp.lt.s32.totalorder %s21, 1
        %s203 = scalar_select %p202, %s21, 1
        %s204 = smul.addr %s203, 4
        %s205 = scalar_lea.vmem %s3, %s204
        %p206 = scmp.eq.s32.totalorder %s22, 0
        // Predicated region
        $region37: #{tpu_custom_call.1} parent=31 // pred_check
          %p207 = pneg %p206
        $region38: #{tpu_custom_call.1} parent=31 // pred_check_branch
          %209 = sbr.rel (%p207) target = $region40
        $region39: #{tpu_custom_call.1} parent=31 // pred_region
          %vm210 = vcmask 3072
          %211 = vst.msk [vmem:[#allocation2] sm:$0xf] %vm210, 0.0
          %212 = vst.msk [vmem:[#allocation3] sm:$0xf] %vm210, -inf
        $region40: #{tpu_custom_call.1} parent=31 // pred_fallthru
          _
        %v213 = vld [vmem:[%s178] sm:$0xff]
        %v214 = vld [vmem:[#allocation2] sm:$0xf]
        %216 = vst [vmem:[#allocation1] ss:$2 sm:$0xff] %v213
        %v217 = vld.sshfl [vmem:[#allocation1] sm:$0xff pattern:$0x75316420]
        %v218 = vld.sshfl [vmem:[#allocation1 + $0x8] sm:$0xff pattern:$0x75316420]
        %vm221 = vcmask 1043456
        %v222 = vsel %vm221, %v217, 0.0
        %v223 = vsel %vm221, %v218, 0.0
        %v224 = vadd.f32 %v222, %v223
        %225 = vadd.xlane.f32.xlu0 %v224
        %v226 = vpop.xlane.xlu0 %225
        %v227 = vadd.f32 %v214, %v226
        %vm228 = vcmask 3072
        %229 = vst.msk [vmem:[#allocation2] sm:$0xf] %vm228, %v227
        %v230 = vld [vmem:[#allocation3] sm:$0xf]
        %231 = vst [vmem:[#allocation1] ss:$2 sm:$0xff] %v213
        %v232 = vld.sshfl [vmem:[#allocation1] sm:$0xff pattern:$0x75316420]
        %v233 = vld.sshfl [vmem:[#allocation1 + $0x8] sm:$0xff pattern:$0x75316420]
        %v236 = vsel %vm221, %v232, -inf
        %v237 = vsel %vm221, %v233, -inf
        %v238 = vmax.f32 %v236, %v237
        %239 = vmax.xlane.f32.xlu0 %v238
        %v240 = vpop.xlane.xlu0 %239
        %v241 = vmax.f32 %v230, %v240
        %242 = vst.msk [vmem:[#allocation3] sm:$0xf] %vm228, %v241
        // Predicated region
        $region41: #{tpu_custom_call.1} parent=31 // pred_check
          %p243 = pneg %p206
        $region42: #{tpu_custom_call.1} parent=31 // pred_check_branch
          %245 = sbr.rel (%p243) target = $region44
        $region43: #{tpu_custom_call.1} parent=31 // pred_region
          %v246 = vld [vmem:[#allocation2] sm:$0xf]
          %v247 = vmul.f32 %v246, 0.00390625
          %v248 = vld [vmem:[#allocation3] sm:$0xf]
          %v249 = vlaneseq
          %v250 = vand.u32 %v249, 127
          %vm251 = vcmp.eq.s32.totalorder %v250, 0
          %253 = vset.pattern.permute.xlu0 0
          %254 = vperm.xlu0 %253, %v247
          %v255 = vpop.permute.xlu0 %254
          %258 = vset.pattern.permute.xlu0 0
          %259 = vperm.xlu0 %258, %v248
          %v260 = vpop.permute.xlu0 %259
          %v262 = vsel %vm251, %v255, %v260
          %v263 = vld [vmem:[%s1] sm:$0x1]
          %v264 = vld [vmem:[%s2] sm:$0xf]
          %vm265 = vcmask 31744
          %v267 = vsel %vm265, %v263, 0
          %v270 = vsel %vm221, %v262, 0
          %272 = vmatpush.msra.mxu0 0.0
          %273 = vmatpush.msra.mxu0 0.0
          %274 = vmatpush.msra.mxu0 0.0
          %275 = vmatpush.msra.mxu0 0.0
          %276 = vmatpush.msra.mxu0 0.0
          %277 = vmatpush.msra.mxu0 0.0
          %278 = vmatpush.msra.mxu0 0.0
          %279 = vmatpush.msra.mxu0 0.0
          %280 = vmatpush.msra.mxu0 0.0
          %281 = vmatpush.msra.mxu0 0.0
          %282 = vmatpush.msra.mxu0 0.0
          %283 = vmatpush.msra.mxu0 0.0
          %284 = vmatpush.msra.mxu0 0.0
          %285 = vmatpush.msra.mxu0 0.0
          %286 = vmatpush.msra.mxu0 0.0
          %287 = vmatpush.msra.mxu0 %v270
          %288 = vmatmul.f32.gmra.mxu0 %v267
          %v289 = vpop.f32.mrf.mxu0
          %v290 = vadd.f32 0.0, %v289
          %291 = vdwg.mxu0
          %v292 = vmax.f32 %v290, 0.0
          %vm293 = vcmask 7168
          %v295 = vsel %vm293, %v264, 0
          %vm297 = vcmask 1040384
          %v299 = vsel %vm297, %v292, 0
          %301 = vmatpush.msra.mxu0 0.0
          %302 = vmatpush.msra.mxu0 0.0
          %303 = vmatpush.msra.mxu0 0.0
          %304 = vmatpush.msra.mxu0 0.0
          %305 = vmatpush.msra.mxu0 0.0
          %306 = vmatpush.msra.mxu0 0.0
          %307 = vmatpush.msra.mxu0 0.0
          %308 = vmatpush.msra.mxu0 0.0
          %309 = vmatpush.msra.mxu0 0.0
          %310 = vmatpush.msra.mxu0 0.0
          %311 = vmatpush.msra.mxu0 0.0
          %312 = vmatpush.msra.mxu0 0.0
          %313 = vmatpush.msra.mxu0 0.0
          %314 = vmatpush.msra.mxu0 0.0
          %315 = vmatpush.msra.mxu0 0.0
          %316 = vmatpush.msra.mxu0 %v299
          %317 = vmatmul.f32.gmra.mxu0 %v295
          %v318 = vpop.f32.mrf.mxu0
          %v319 = vadd.f32 0.0, %v318
          %320 = vdwg.mxu0
          %vm321 = vcmask 11264
          %v322 = vsel %vm321, %v319, 0.0
          %323 = vadd.xlane.f32.xlu0 %v322
          %v324 = vpop.xlane.xlu0 %323
          %v325 = vsub.f32 0.0, %v324
          %v326 = vmul.f32 %v325, 1.442695
          %v327 = vpow.pop %v326
          %v328 = vadd.f32 %v327, 1.0
          %v329 = vrcp.pop %v328
          %v330 = vmul.f32 %v328, %v329
          %v331 = vsub.f32 1.0, %v330
          %v332 = vmul.f32 %v329, %v331
          %v333 = vadd.f32 %v329, %v332
          %vm334 = vweird.f32 %v328
          %vm335 = vweird.f32 %v329
          %vm336 = vmor %vm334, %vm335
          %v337 = vsel %vm336, %v329, %v333
          %v338 = vand.u32 2147483647, %v328
          %vm339 = vcmp.eq.f32.partialorder %v338, 8.507059e+37
          %v340 = vand.u32 %v328, 2147483648
          %v341 = vor.u32 1.1754944e-38, %v340
          %v342 = vsel %vm339, %v341, %v337
          %v343 = vmul.f32 1.0, %v342
          %344 = vst.msk [vmem:[%s205] sm:$0xf] %vm228, %v343
        $region44: #{tpu_custom_call.1} parent=31 // pred_fallthru
          _
        %p345 = scmp.lt.s32.totalorder %s21, 1
        %s346 = scalar_select %p345, %s21, 1
        %s347 = smul.addr %s346, 4
        %s348 = scalar_lea.vmem %s3, %s347
        // Predicated region
        $region45: #{tpu_custom_call.1} parent=31 // pred_check
          %p349 = pneg %p117
        $region46: #{tpu_custom_call.1} parent=31 // pred_check_branch
          %351 = sbr.rel (%p349) target = $region48
        $region47: #{tpu_custom_call.1} parent=31 // pred_region
          _
        $region48: #{tpu_custom_call.1} parent=31 // pred_fallthru
          _
      $region32: #{tpu_custom_call.1} parent=5 // pred_fallthru
        _
      %p352 = scmp.le.s32.totalorder 2, %s12
      // Predicated region
      $region49: #{tpu_custom_call.1} parent=5 // pred_check
        %p353 = pneg %p352
      $region50: #{tpu_custom_call.1} parent=5 // pred_check_branch
        %355 = sbr.rel (%p353) target = $region52
      $region51: #{tpu_custom_call.1} parent=5 // pred_region
        %s356 = ssub.s32 %s12, 2
        // Predicated region
        $region53: #{tpu_custom_call.1} parent=51 // pred_check
          %p357 = pneg %p123
        $region54: #{tpu_custom_call.1} parent=51 // pred_check_branch
          %359 = sbr.rel (%p357) target = $region56
        $region55: #{tpu_custom_call.1} parent=51 // pred_region
          %p360 = scmp.lt.s32.totalorder %s23, 1
          %s361 = scalar_select %p360, %s23, 1
          %s362 = smul.addr %s361, 4
          %s363 = scalar_lea.vmem %s3, %s362
        $region56: #{tpu_custom_call.1} parent=51 // pred_fallthru
          _
      $region52: #{tpu_custom_call.1} parent=5 // pred_fallthru
        _
    $region6: #{tpu_custom_call.1} parent=1 // loop_footer
      %s16 = sadd.s32 1, %s12
    $region7: #{tpu_custom_call.1} parent=1 // loop_footer_branch
      %11 = sbr.rel target = $region3
    $region8: #{tpu_custom_call.1} parent=1 // loop_exit
      _
    %364 = vsyncpa [#allocation5], 1
    %s365 = scalar_lea.sflag [#allocation5], 1
    %366 = vsyncpa %s365, 1

</llo_original>
